<compile_context>
chip_gen: v5e
topology: v5e:2x2
jax: 0.10.0
libtpu: 0.0.40
codegen_flags: <defaults>
</compile_context>

<pallas_src>
import functools

import jax
import jax.numpy as jnp
from jax import lax
from jax.experimental import pallas as pl
from jax.experimental.pallas import tpu as pltpu

_LANES = 128
_SUBLANES = 8
_TILE_ROWS = 4096            # (4096, 128) f32 tile = 2 MiB per operand buffer.


# ----------------------------------------------------------------------------
# Fused kernel: tiled masked BCE sum (heatmap) + resident L1 sums (bbox, opts).
# ----------------------------------------------------------------------------
def _fused_loss_kernel(pts_p_ref, pts_y_ref, bbox_p_ref, bbox_y_ref,
                       opt_p_ref, opt_y_ref, sums_ref, acc_ref, *,
                       total_rows, block_rows, need_tail_mask, hard_labels):
    """Grid axis 0 streams (block_rows, 128) heatmap tiles; bbox/opts are tiny
    whole-array resident VMEM operands reduced on the last grid step."""
    i = pl.program_id(0)
    last = pl.num_programs(0) - 1

    @pl.when(i == 0)
    def _init():
        acc_ref[...] = jnp.zeros_like(acc_ref)

    p = pts_p_ref[...].astype(jnp.float32)
    y = pts_y_ref[...].astype(jnp.float32)

    # nn.BCELoss semantics: log terms clamped at -100.
    if hard_labels:
        # Single log (halves EUP work); ONLY valid for exact 0/1 labels.
        elem = -jnp.maximum(jnp.log(jnp.where(y > 0.5, p, 1.0 - p)), -100.0)
    else:
        log_p = jnp.maximum(jnp.log(p), -100.0)
        log_1mp = jnp.maximum(jnp.log(1.0 - p), -100.0)
        elem = -(y * log_p + (1.0 - y) * log_1mp)

    def _fold(e):
        # Fold the tile onto an (8, 128) vreg accumulator: elementwise VPU adds
        # only; the single cross-lane/sublane reduce is deferred to the end.
        return e.reshape(block_rows // _SUBLANES, _SUBLANES, _LANES).sum(axis=0)

    if need_tail_mask:
        # Only the final (partial) grid block contains OOB garbage rows; mask
        # them there and keep the steady-state path mask-free.
        @pl.when(i != last)
        def _steady():
            acc_ref[...] += _fold(elem)

        @pl.when(i == last)
        def _masked_tail():
            row = lax.broadcasted_iota(jnp.int32, (block_rows, _LANES), 0)
            valid = (i * block_rows + row) < total_rows
            # where (not *): kills NaNs coming from the OOB garbage region.
            acc_ref[...] += _fold(jnp.where(valid, elem, 0.0))
    else:
        acc_ref[...] += _fold(elem)

    @pl.when(i == last)
    def _finalize():
        sums_ref[0] = jnp.sum(acc_ref[...])
        sums_ref[1] = jnp.sum(jnp.abs(bbox_p_ref[...].astype(jnp.float32)
                                      - bbox_y_ref[...].astype(jnp.float32)))
        sums_ref[2] = jnp.sum(jnp.abs(opt_p_ref[...].astype(jnp.float32)
                                      - opt_y_ref[...].astype(jnp.float32)))


def _as_lane_slab(x):
    """Reshape x to a (rows, 128) slab (rows % 8 == 0), keeping its dtype.

    Free (copy-less) reshape when numel % 1024 == 0 (true for typical heatmap
    shapes).  Otherwise the tail is zero-padded; zeros contribute exactly 0 to
    BCE (p=0, y=0 with the -100 clamp), so no runtime mask is needed for them.
    TODO(synk): stream the <1024-element ragged tail separately to skip this
    wrapper-side HBM pad copy on awkward shapes.
    """
    flat = x.reshape(-1)
    n = flat.shape[0]
    chunk = _SUBLANES * _LANES
    rows = pl.cdiv(n, chunk) * _SUBLANES
    total = rows * _LANES
    if total != n:
        flat = jnp.pad(flat, (0, total - n))
    return flat.reshape(rows, _LANES)


def _fused_loss_sums(points_pred, points_label, bbox_pred, bbox_label,
                     opt_pred, opt_label, *, tile_rows=_TILE_ROWS,
                     hard_labels=False):
    """One pallas_call -> (bce_sum, bbox_abs_sum, opt_abs_sum)."""
    n_points = points_pred.size
    assert n_points > 0
    assert n_points < 2**31, "int32 row indexing would overflow"

    p_slab = _as_lane_slab(points_pred)
    y_slab = _as_lane_slab(points_label)
    rows = p_slab.shape[0]

    block_rows = min(int(tile_rows), rows)
    assert block_rows % _SUBLANES == 0
    num_steps = pl.cdiv(rows, block_rows)
    need_tail_mask = (rows % block_rows) != 0

    bbox_p = bbox_pred.reshape(1, -1)
    bbox_y = bbox_label.reshape(1, -1)
    opt_p = opt_pred.reshape(1, -1)
    opt_y = opt_label.reshape(1, -1)

    tile_spec = pl.BlockSpec((block_rows, _LANES), lambda i: (i, 0))
    small = lambda a: pl.BlockSpec(a.shape, lambda i: (0, 0))  # resident block

    # 2 heatmap streams x 2 pipeline buffers x tile (+slack for the resident
    # operands / accumulator).  Explicit so the enlarged tile compiles under
    # v5e's 16 MiB default scoped VMEM, capped well below v7x's 64 MiB.
    buf_bytes = block_rows * _LANES * p_slab.dtype.itemsize
    vmem_limit = int(min(max(2 * 2 * 2 * buf_bytes + (4 << 20), 16 << 20),
                         48 << 20))

    kernel = functools.partial(
        _fused_loss_kernel, total_rows=rows, block_rows=block_rows,
        need_tail_mask=need_tail_mask, hard_labels=hard_labels)

    sums = pl.pallas_call(
        kernel,
        out_shape=jax.ShapeDtypeStruct((3,), jnp.float32),
        grid_spec=pltpu.PrefetchScalarGridSpec(
            num_scalar_prefetch=0,
            grid=(num_steps,),
            in_specs=[tile_spec, tile_spec,
                      small(bbox_p), small(bbox_y),
                      small(opt_p), small(opt_y)],
            out_specs=pl.BlockSpec(memory_space=pltpu.MemorySpace.SMEM),
            scratch_shapes=[pltpu.VMEM((_SUBLANES, _LANES), jnp.float32)],
        ),
        compiler_params=pltpu.CompilerParams(
            dimension_semantics=("arbitrary",),
            vmem_limit_bytes=vmem_limit),
    )(p_slab, y_slab, bbox_p, bbox_y, opt_p, opt_y)
    return sums[0], sums[1], sums[2]


# ----------------------------------------------------------------------------
# Jitted CustomLoss2 core + thin wrapper (config choices are static Python).
# ----------------------------------------------------------------------------
@functools.partial(jax.jit,
                   static_argnames=("bbox_weight", "opt_weight",
                                    "use_bbox", "use_opt",
                                    "tile_rows", "hard_labels"))
def _custom_loss2_core(points_p, points_y, bbox_p, bbox_y, opt_p, opt_y, *,
                       bbox_weight, opt_weight, use_bbox, use_opt,
                       tile_rows=_TILE_ROWS, hard_labels=False):
    bce_sum, bbox_sum, opt_sum = _fused_loss_sums(
        points_p, points_y, bbox_p, bbox_y, opt_p, opt_y,
        tile_rows=tile_rows, hard_labels=hard_labels)

    points_loss = bce_sum / jnp.float32(points_p.size)
    loss = points_loss

    if use_bbox:
        bbox_loss = bbox_sum / jnp.float32(bbox_p.size)
        loss = loss + bbox_loss * bbox_weight
    else:
        bbox_loss = jnp.float32(-1.0)

    if use_opt:
        opt_loss = opt_sum / jnp.float32(opt_p.size)
        loss = loss + opt_loss * opt_weight
    else:
        opt_loss = jnp.float32(-1.0)

    return loss, points_loss, bbox_loss, opt_loss


class Config:
    device = None                 # interface parity with the PyTorch module
    loss_weights = (1.0, 0.5)     # [bbox L1 weight, opt L1 weight]

    class opt:
        flag = True


def custom_loss2_forward(out, batch, config, mode_idx=None, *,
                         tile_rows=_TILE_ROWS, hard_labels=False):
    """CustomLoss2.forward.  print_loss holds device scalars; convert with
    float() only when actually logging (PyTorch's .item() equivalent, kept
    out of the hot path)."""
    use_bbox = float(config.loss_weights[0]) > 0.0
    use_opt = bool(config.opt.flag) and float(config.loss_weights[1]) > 0.0

    dummy = jnp.zeros((1, 1), jnp.float32)
    bbox_p = out["bbox"] if use_bbox else dummy
    bbox_y = batch["bbox"] if use_bbox else dummy
    opt_p = out["opts"] if use_opt else dummy
    opt_y = batch["opts_gt"] if use_opt else dummy

    loss, points_loss, bbox_loss, opt_loss = _custom_loss2_core(
        out["points"], batch["points"], bbox_p, bbox_y, opt_p, opt_y,
        bbox_weight=float(config.loss_weights[0]),
        opt_weight=float(config.loss_weights[1]),
        use_bbox=use_bbox, use_opt=use_opt,
        tile_rows=tile_rows, hard_labels=hard_labels)

    print_loss = {
        "loss": loss,
        "bbox_loss": bbox_loss,
        "heatmap_loss": points_loss,
        "opt_loss": opt_loss,
    }
    return loss, print_loss


# ----------------------------------------------------------------------------
# Pure-JAX reference for verification
# ----------------------------------------------------------------------------
def _reference(out, batch, config):
    p = out["points"].astype(jnp.float32)
    y = batch["points"].astype(jnp.float32)
    bce = -(y * jnp.maximum(jnp.log(p), -100.0)
            + (1.0 - y) * jnp.maximum(jnp.log(1.0 - p), -100.0))
    points_loss = jnp.mean(bce)
    loss = points_loss
    if config.loss_weights[0] > 0.0:
        loss = loss + jnp.mean(jnp.abs(out["bbox"] - batch["bbox"])) \
            * config.loss_weights[0]
    if config.opt.flag and config.loss_weights[1] > 0.0:
        loss = loss + jnp.mean(jnp.abs(out["opts"] - batch["opts_gt"])) \
            * config.loss_weights[1]
    return loss


if __name__ == "__main__":
    keys = jax.random.split(jax.random.PRNGKey(0), 12)
    cfg = Config()

    # --- small shapes consistent with the module (single tile, lane-tail pad)
    B, C, H, W = 2, 1, 16, 16     # heatmap (NCHW, sigmoid outputs)
    NBOX, NOPT = 4, 8
    out = {
        "points": jax.nn.sigmoid(jax.random.normal(keys[0], (B, C, H, W), jnp.float32)),
        "bbox": jax.random.normal(keys[1], (B, NBOX), jnp.float32),
        "opts": jax.random.normal(keys[2], (B, NOPT), jnp.float32),
    }
    batch = {
        "points": (jax.random.uniform(keys[3], (B, C, H, W)) > 0.7).astype(jnp.float32),
        "bbox": jax.random.normal(keys[4], (B, NBOX), jnp.float32),
        "opts_gt": jax.random.normal(keys[5], (B, NOPT), jnp.float32),
    }
    loss, print_loss = custom_loss2_forward(out, batch, cfg, mode_idx=0)
    loss = jax.block_until_ready(loss)
    ref = jax.block_until_ready(_reference(out, batch, cfg))
    assert jnp.allclose(loss, ref, rtol=1e-4, atol=1e-5), (loss, ref)

    # --- larger heatmap, default (clamped) tile: single big block path ------
    B2, C2, H2, W2 = 2, 4, 96, 96
    out2 = {
        "points": jax.nn.sigmoid(jax.random.normal(keys[6], (B2, C2, H2, W2), jnp.float32)),
        "bbox": jax.random.normal(keys[7], (B2, NBOX), jnp.float32),
        "opts": jax.random.normal(keys[8], (B2, NOPT), jnp.float32),
    }
    batch2 = {
        "points": (jax.random.uniform(keys[9], (B2, C2, H2, W2)) > 0.7).astype(jnp.float32),
        "bbox": jax.random.normal(keys[10], (B2, NBOX), jnp.float32),
        "opts_gt": jax.random.normal(keys[11], (B2, NOPT), jnp.float32),
    }
    loss2, _ = custom_loss2_forward(out2, batch2, cfg, mode_idx=0)
    loss2 = jax.block_until_ready(loss2)
    ref2 = jax.block_until_ready(_reference(out2, batch2, cfg))
    assert jnp.allclose(loss2, ref2, rtol=1e-4, atol=1e-5), (loss2, ref2)

    # --- same data, forced small tile: exercises multi-step grid + the
    #     last-step-only mask on a partial final block (576 rows, tile 128) ---
    loss3, _ = custom_loss2_forward(out2, batch2, cfg, mode_idx=0, tile_rows=128)
    loss3 = jax.block_until_ready(loss3)
    assert jnp.allclose(loss3, ref2, rtol=1e-4, atol=1e-5), (loss3, ref2)

    print("KERNEL_OK")
</pallas_src>

<mosaic_0001>
module attributes {stable_mosaic.version = 11 : i64} {
  func.func @_fused_loss_kernel(%arg0: i32, %arg1: memref<8x128xf32, #tpu.memory_space<vmem>>, %arg2: memref<8x128xf32, #tpu.memory_space<vmem>>, %arg3: memref<1x8xf32, #tpu.memory_space<vmem>>, %arg4: memref<1x8xf32, #tpu.memory_space<vmem>>, %arg5: memref<1x16xf32, #tpu.memory_space<vmem>>, %arg6: memref<1x16xf32, #tpu.memory_space<vmem>>, %arg7: memref<3xf32, #tpu.memory_space<smem>>, %arg8: memref<8x128xf32, #tpu.memory_space<vmem>>) attributes {dimension_semantics = [#tpu.dimension_semantics<arbitrary>], iteration_bounds = array<i64: 1>, scalar_prefetch = 0 : i64, scratch_operands = 1 : i64, tpu.core_type = #tpu.core_type<tc>, window_params = [{transform_indices = @transform_0, window_bounds = array<i64: 8, 128>}, {transform_indices = @transform_1, window_bounds = array<i64: 8, 128>}, {pipeline_mode = #tpu.pipeline_mode<synchronous>, transform_indices = @transform_2, window_bounds = array<i64: 1, 8>}, {pipeline_mode = #tpu.pipeline_mode<synchronous>, transform_indices = @transform_3, window_bounds = array<i64: 1, 8>}, {pipeline_mode = #tpu.pipeline_mode<synchronous>, transform_indices = @transform_4, window_bounds = array<i64: 1, 16>}, {pipeline_mode = #tpu.pipeline_mode<synchronous>, transform_indices = @transform_5, window_bounds = array<i64: 1, 16>}, {transform_indices = @transform_6, window_bounds = array<i64: 3>}]} {
    %c0_i32 = arith.constant 0 : i32
    %0 = arith.cmpi eq, %arg0, %c0_i32 : i32
    %1 = arith.extui %0 : i1 to i32
    %c0_i32_0 = arith.constant 0 : i32
    %2 = arith.cmpi ne, %1, %c0_i32_0 : i32
    scf.if %2 {
      %cst_15 = arith.constant 0.000000e+00 : f32
      %28 = vector.broadcast %cst_15 : f32 to vector<8x128xf32>
      %c0_16 = arith.constant 0 : index
      %c0_17 = arith.constant 0 : index
      %29 = vector.load %arg8[%c0_16, %c0_17] : memref<8x128xf32, #tpu.memory_space<vmem>>, vector<8x128xf32>
      tpu.vector_store %arg8[%c0_16, %c0_17], %28 {strides = array<i32>} : memref<8x128xf32, #tpu.memory_space<vmem>>, vector<8x128xf32>,
    } else {
    }
    %c0 = arith.constant 0 : index
    %c0_1 = arith.constant 0 : index
    %3 = vector.load %arg1[%c0, %c0_1] : memref<8x128xf32, #tpu.memory_space<vmem>>, vector<8x128xf32>
    %c0_2 = arith.constant 0 : index
    %c0_3 = arith.constant 0 : index
    %4 = vector.load %arg2[%c0_2, %c0_3] : memref<8x128xf32, #tpu.memory_space<vmem>>, vector<8x128xf32>
    %5 = math.log %3 : vector<8x128xf32>
    %cst = arith.constant -1.000000e+02 : f32
    %6 = vector.broadcast %cst : f32 to vector<8x128xf32>
    %7 = arith.maximumf %5, %6 : vector<8x128xf32>
    %cst_4 = arith.constant 1.000000e+00 : f32
    %8 = vector.broadcast %cst_4 : f32 to vector<8x128xf32>
    %9 = arith.subf %8, %3 : vector<8x128xf32>
    %10 = math.log %9 : vector<8x128xf32>
    %cst_5 = arith.constant -1.000000e+02 : f32
    %11 = vector.broadcast %cst_5 : f32 to vector<8x128xf32>
    %12 = arith.maximumf %10, %11 : vector<8x128xf32>
    %13 = arith.mulf %4, %7 : vector<8x128xf32>
    %cst_6 = arith.constant 1.000000e+00 : f32
    %14 = vector.broadcast %cst_6 : f32 to vector<8x128xf32>
    %15 = arith.subf %14, %4 : vector<8x128xf32>
    %16 = arith.mulf %15, %12 : vector<8x128xf32>
    %17 = arith.addf %13, %16 : vector<8x128xf32>
    %cst_7 = arith.constant 0.000000e+00 : f32
    %18 = vector.broadcast %cst_7 : f32 to vector<8x128xf32>
    %19 = arith.subf %18, %17 : vector<8x128xf32>
    %c0_8 = arith.constant 0 : index
    %c0_9 = arith.constant 0 : index
    %20 = vector.load %arg8[%c0_8, %c0_9] : memref<8x128xf32, #tpu.memory_space<vmem>>, vector<8x128xf32>
    %21 = vector.shape_cast %19 : vector<8x128xf32> to vector<1x8x128xf32>
    %cst_10 = arith.constant dense<0.000000e+00> : vector<8x128xf32>
    %22 = vector.multi_reduction <add>, %21, %cst_10 [0] : vector<1x8x128xf32> to vector<8x128xf32>
    %23 = arith.addf %20, %22 : vector<8x128xf32>
    %c0_11 = arith.constant 0 : index
    %c0_12 = arith.constant 0 : index
    %24 = vector.load %arg8[%c0_11, %c0_12] : memref<8x128xf32, #tpu.memory_space<vmem>>, vector<8x128xf32>
    tpu.vector_store %arg8[%c0_11, %c0_12], %23 {strides = array<i32>} : memref<8x128xf32, #tpu.memory_space<vmem>>, vector<8x128xf32>,
    %c0_i32_13 = arith.constant 0 : i32
    %25 = arith.cmpi eq, %arg0, %c0_i32_13 : i32
    %26 = arith.extui %25 : i1 to i32
    %c0_i32_14 = arith.constant 0 : i32
    %27 = arith.cmpi ne, %26, %c0_i32_14 : i32
    scf.if %27 {
      %c0_15 = arith.constant 0 : index
      %c0_16 = arith.constant 0 : index
      %28 = vector.load %arg8[%c0_15, %c0_16] : memref<8x128xf32, #tpu.memory_space<vmem>>, vector<8x128xf32>
      %29 = vector.shape_cast %28 : vector<8x128xf32> to vector<1x8x128xf32>
      %cst_17 = arith.constant dense<0.000000e+00> : vector<1xf32>
      %30 = vector.multi_reduction <add>, %29, %cst_17 [1, 2] : vector<1x8x128xf32> to vector<1xf32>
      %31 = vector.shape_cast %30 : vector<1xf32> to vector<1x1x1xf32>
      %32 = vector.extract %31[0, 0, 0] : f32 from vector<1x1x1xf32>
      %c0_18 = arith.constant 0 : index
      %33 = memref.load %arg7[%c0_18] : memref<3xf32, #tpu.memory_space<smem>>
      memref.store %32, %arg7[%c0_18] : memref<3xf32, #tpu.memory_space<smem>>
      %c0_19 = arith.constant 0 : index
      %c0_20 = arith.constant 0 : index
      %34 = vector.load %arg3[%c0_19, %c0_20] : memref<1x8xf32, #tpu.memory_space<vmem>>, vector<1x8xf32>
      %c0_21 = arith.constant 0 : index
      %c0_22 = arith.constant 0 : index
      %35 = vector.load %arg4[%c0_21, %c0_22] : memref<1x8xf32, #tpu.memory_space<vmem>>, vector<1x8xf32>
      %36 = arith.subf %34, %35 : vector<1x8xf32>
      %37 = math.absf %36 : vector<1x8xf32>
      %38 = vector.shape_cast %37 : vector<1x8xf32> to vector<1x1x8xf32>
      %cst_23 = arith.constant dense<0.000000e+00> : vector<1xf32>
      %39 = vector.multi_reduction <add>, %38, %cst_23 [1, 2] : vector<1x1x8xf32> to vector<1xf32>
      %40 = vector.shape_cast %39 : vector<1xf32> to vector<1x1x1xf32>
      %41 = vector.extract %40[0, 0, 0] : f32 from vector<1x1x1xf32>
      %c1 = arith.constant 1 : index
      %42 = memref.load %arg7[%c1] : memref<3xf32, #tpu.memory_space<smem>>
      memref.store %41, %arg7[%c1] : memref<3xf32, #tpu.memory_space<smem>>
      %c0_24 = arith.constant 0 : index
      %c0_25 = arith.constant 0 : index
      %43 = vector.load %arg5[%c0_24, %c0_25] : memref<1x16xf32, #tpu.memory_space<vmem>>, vector<1x16xf32>
      %c0_26 = arith.constant 0 : index
      %c0_27 = arith.constant 0 : index
      %44 = vector.load %arg6[%c0_26, %c0_27] : memref<1x16xf32, #tpu.memory_space<vmem>>, vector<1x16xf32>
      %45 = arith.subf %43, %44 : vector<1x16xf32>
      %46 = math.absf %45 : vector<1x16xf32>
      %47 = vector.shape_cast %46 : vector<1x16xf32> to vector<1x1x16xf32>
      %cst_28 = arith.constant dense<0.000000e+00> : vector<1xf32>
      %48 = vector.multi_reduction <add>, %47, %cst_28 [1, 2] : vector<1x1x16xf32> to vector<1xf32>
      %49 = vector.shape_cast %48 : vector<1xf32> to vector<1x1x1xf32>
      %50 = vector.extract %49[0, 0, 0] : f32 from vector<1x1x1xf32>
      %c2 = arith.constant 2 : index
      %51 = memref.load %arg7[%c2] : memref<3xf32, #tpu.memory_space<smem>>
      memref.store %50, %arg7[%c2] : memref<3xf32, #tpu.memory_space<smem>>
    } else {
    }
    return
  }
  func.func @transform_0(%arg0: i32) -> (i32, i32) {
    %c0_i32 = arith.constant 0 : i32
    %c0_i32_0 = arith.constant 0 : i32
    return %arg0, %c0_i32 : i32, i32
  }
  func.func @transform_1(%arg0: i32) -> (i32, i32) {
    %c0_i32 = arith.constant 0 : i32
    %c0_i32_0 = arith.constant 0 : i32
    return %arg0, %c0_i32 : i32, i32
  }
  func.func @transform_2(%arg0: i32) -> (i32, i32) {
    %c0_i32 = arith.constant 0 : i32
    %c0_i32_0 = arith.constant 0 : i32
    %c0_i32_1 = arith.constant 0 : i32
    return %c0_i32, %c0_i32_0 : i32, i32
  }
  func.func @transform_3(%arg0: i32) -> (i32, i32) {
    %c0_i32 = arith.constant 0 : i32
    %c0_i32_0 = arith.constant 0 : i32
    %c0_i32_1 = arith.constant 0 : i32
    return %c0_i32, %c0_i32_0 : i32, i32
  }
  func.func @transform_4(%arg0: i32) -> (i32, i32) {
    %c0_i32 = arith.constant 0 : i32
    %c0_i32_0 = arith.constant 0 : i32
    %c0_i32_1 = arith.constant 0 : i32
    return %c0_i32, %c0_i32_0 : i32, i32
  }
  func.func @transform_5(%arg0: i32) -> (i32, i32) {
    %c0_i32 = arith.constant 0 : i32
    %c0_i32_0 = arith.constant 0 : i32
    %c0_i32_1 = arith.constant 0 : i32
    return %c0_i32, %c0_i32_0 : i32, i32
  }
  func.func @transform_6(%arg0: i32) -> i32 {
    %c0_i32 = arith.constant 0 : i32
    %c0_i32_0 = arith.constant 0 : i32
    return %c0_i32 : i32
  }
}

</mosaic_0001>

<llo_original>
// kernel: _custom_loss2_core.1
$region0: #{_custom_loss2_core.1}
  #allocation0 [shape = 'u32[]', space=smem, size = 0x4, offset = 0x4, fixed_abs, tag = 'smem constant byte address 0x4 - core index']
  #allocation1 [shape = 'u32[72,128]{1,0:T(1,128)}', space=vmem, size = 0x9000, scoped, tag = 'internal scratch']
  #allocation2 [shape = 'f32[8,128]{1,0:T(8,128)}', space=vmem, size = 0x1000, scoped, tag = 'scratch operand']
  %s0 = inlined_call_operand.vmem [shape: f32[8,128], index: 0, kind: input, shape index: {}]
  %s1 = inlined_call_operand.vmem [shape: f32[8,128], index: 1, kind: input, shape index: {}]
  %s2 = inlined_call_operand.vmem [shape: f32[1,8], index: 2, kind: input, shape index: {}]
  %s3 = inlined_call_operand.vmem [shape: f32[1,8], index: 3, kind: input, shape index: {}]
  %s4 = inlined_call_operand.vmem [shape: f32[1,16], index: 4, kind: input, shape index: {}]
  %s5 = inlined_call_operand.vmem [shape: f32[1,16], index: 5, kind: input, shape index: {}]
  %s6 = inlined_call_operand.vmem [shape: f32[3], index: 6, kind: output, shape index: {}]
  %s7 = sld [smem:[#allocation0]]
  $region42: #{_custom_loss2_core.1} parent=0
    _
  %s9 = ssub.s32 1, %s7
  %s10 = scalar_select 0, %s9, %s7
  $region1: #{_custom_loss2_core.1} parent=0
    #allocation3 [shape = 'u8[512]{0}', space=smem, size = 0x200, scoped, tag = 'output window, operand 0, single buffered']
    #allocation4 [shape = 's32[1]{0}', space=sflag, size = 0x4, scoped, tag = 'scoped memory for _custom_loss2_core.1']
    %11 = vsyncpa [#allocation4], 0
    // Predicated region
    $region2: #{_custom_loss2_core.1} parent=1 // pred_check
      _
    $region3: #{_custom_loss2_core.1} parent=1 // pred_check_branch
      %13 = sbr.rel (0) target = $region5
    $region4: #{_custom_loss2_core.1} parent=1 // pred_region
      _
    $region5: #{_custom_loss2_core.1} parent=1 // pred_fallthru
      _
    // Predicated region
    $region6: #{_custom_loss2_core.1} parent=1 // pred_check
      _
    $region7: #{_custom_loss2_core.1} parent=1 // pred_check_branch
      %15 = sbr.rel (0) target = $region9
    $region8: #{_custom_loss2_core.1} parent=1 // pred_region
      _
    $region9: #{_custom_loss2_core.1} parent=1 // pred_fallthru
      _
    // Predicated region
    $region10: #{_custom_loss2_core.1} parent=1 // pred_check
      _
    $region11: #{_custom_loss2_core.1} parent=1 // pred_check_branch
      %17 = sbr.rel (0) target = $region13
    $region12: #{_custom_loss2_core.1} parent=1 // pred_region
      _
    $region13: #{_custom_loss2_core.1} parent=1 // pred_fallthru
      _
    // Predicated region
    $region14: #{_custom_loss2_core.1} parent=1 // pred_check
      _
    $region15: #{_custom_loss2_core.1} parent=1 // pred_check_branch
      %19 = sbr.rel (0) target = $region17
    $region16: #{_custom_loss2_core.1} parent=1 // pred_region
      _
    $region17: #{_custom_loss2_core.1} parent=1 // pred_fallthru
      _
    // Predicated region
    $region18: #{_custom_loss2_core.1} parent=1 // pred_check
      _
    $region19: #{_custom_loss2_core.1} parent=1 // pred_check_branch
      %21 = sbr.rel (0) target = $region21
    $region20: #{_custom_loss2_core.1} parent=1 // pred_region
      _
    $region21: #{_custom_loss2_core.1} parent=1 // pred_fallthru
      _
    // Predicated region
    $region22: #{_custom_loss2_core.1} parent=1 // pred_check
      _
    $region23: #{_custom_loss2_core.1} parent=1 // pred_check_branch
      %23 = sbr.rel (0) target = $region25
    $region24: #{_custom_loss2_core.1} parent=1 // pred_region
      _
    $region25: #{_custom_loss2_core.1} parent=1 // pred_fallthru
      _
    %p24 = scmp.eq.s32.totalorder 0, 0
    // Predicated region
    $region26: #{_custom_loss2_core.1} parent=1 // pred_check
      %p25 = pneg %p24
    $region27: #{_custom_loss2_core.1} parent=1 // pred_check_branch
      %27 = sbr.rel (%p25) target = $region29
    $region28: #{_custom_loss2_core.1} parent=1 // pred_region
      %28 = vst [vmem:[#allocation2] sm:$0xff] 0.0
    $region29: #{_custom_loss2_core.1} parent=1 // pred_fallthru
      _
    %v29 = vld [vmem:[%s0] sm:$0xff]
    %v30 = vld [vmem:[%s1] sm:$0xff]
    %v31 = vlog2.pop %v29
    %v32 = vmul.f32 %v31, 0.6931472
    %v33 = vmax.f32 %v32, -100.0
    %v34 = vsub.f32 1.0, %v29
    %v35 = vlog2.pop %v34
    %v36 = vmul.f32 %v35, 0.6931472
    %v37 = vmax.f32 %v36, -100.0
    %v38 = vmul.f32 %v30, %v33
    %v39 = vsub.f32 1.0, %v30
    %v40 = vmul.f32 %v39, %v37
    %v41 = vadd.f32 %v38, %v40
    %v42 = vsub.f32 0.0, %v41
    %v43 = vld [vmem:[#allocation2] sm:$0xff]
    %v44 = vadd.f32 %v42, 0.0
    %v45 = vadd.f32 %v43, %v44
    %46 = vst [vmem:[#allocation2] sm:$0xff] %v45
    // Predicated region
    $region30: #{_custom_loss2_core.1} parent=1 // pred_check
      %p47 = pneg %p24
    $region31: #{_custom_loss2_core.1} parent=1 // pred_check_branch
      %49 = sbr.rel (%p47) target = $region33
    $region32: #{_custom_loss2_core.1} parent=1 // pred_region
      %v50 = vld [vmem:[#allocation2] sm:$0xff]
      %51 = vadd.xlane.f32.xlu0 %v50
      %v52 = vpop.xlane.xlu0 %51
      %v53 = vrot.slane %v52, 4
      %v54 = vadd.f32 %v52, %v53
      %v55 = vrot.slane %v54, 2
      %v56 = vadd.f32 %v54, %v55
      %v57 = vrot.slane %v56, 1
      %v58 = vadd.f32 %v56, %v57
      %s59 = vtos %v58
      %s60 = scalar_lea.smem [#allocation3], 0
      %61 = sst [smem:[%s60]] %s59
      %v62 = vld [vmem:[%s2] sm:$0x1]
      %v63 = vld [vmem:[%s3] sm:$0x1]
      %v64 = vsub.f32 %v62, %v63
      %v65 = vand.u32 2147483647, %v64
      %vm66 = vcmask 57344
      %v67 = vsel %vm66, %v65, 0.0
      %68 = vadd.xlane.f32.xlu0 %v67
      %v69 = vpop.xlane.xlu0 %68
      %v70 = vrot.slane %v69, 4
      %v71 = vadd.f32 %v69, %v70
      %v72 = vrot.slane %v71, 2
      %v73 = vadd.f32 %v71, %v72
      %v74 = vrot.slane %v73, 1
      %v75 = vadd.f32 %v73, %v74
      %s76 = vtos %v75
      %s77 = scalar_lea.smem [#allocation3], 1
      %78 = sst [smem:[%s77]] %s76
      %v79 = vld [vmem:[%s4] sm:$0x1]
      %v80 = vld [vmem:[%s5] sm:$0x1]
      %v81 = vsub.f32 %v79, %v80
      %v82 = vand.u32 2147483647, %v81
      %vm83 = vcmask 122880
      %v84 = vsel %vm83, %v82, 0.0
      %85 = vadd.xlane.f32.xlu0 %v84
      %v86 = vpop.xlane.xlu0 %85
      %v87 = vrot.slane %v86, 4
      %v88 = vadd.f32 %v86, %v87
      %v89 = vrot.slane %v88, 2
      %v90 = vadd.f32 %v88, %v89
      %v91 = vrot.slane %v90, 1
      %v92 = vadd.f32 %v90, %v91
      %s93 = vtos %v92
      %s94 = scalar_lea.smem [#allocation3], 2
      %95 = sst [smem:[%s94]] %s93
    $region33: #{_custom_loss2_core.1} parent=1 // pred_fallthru
      _
    // Predicated region
    $region34: #{_custom_loss2_core.1} parent=1 // pred_check
      _
    $region35: #{_custom_loss2_core.1} parent=1 // pred_check_branch
      %97 = sbr.rel (0) target = $region37
    $region36: #{_custom_loss2_core.1} parent=1 // pred_region
      %99 = vsyncadd [#allocation4], 0
      %s101 = sshll.u32 %s6, 4
      %s102 = int_to_ptr.vmem [resolvable:$true] %s101
      %104 = dma.smem_to_vmem [#allocation3], 16, %s102, [#allocation4]
    $region37: #{_custom_loss2_core.1} parent=1 // pred_fallthru
      _
    // Predicated region
    $region38: #{_custom_loss2_core.1} parent=1 // pred_check
      _
    $region39: #{_custom_loss2_core.1} parent=1 // pred_check_branch
      %106 = sbr.rel (0) target = $region41
    $region40: #{_custom_loss2_core.1} parent=1 // pred_region
      %108 = dma.done [#allocation4], 16
    $region41: #{_custom_loss2_core.1} parent=1 // pred_fallthru
      _
    %109 = sfence
    %110 = vsyncpa [#allocation4], 1

</llo_original>
